<compile_context>
chip_gen: v5e
topology: v5e:2x2
jax: 0.10.0
libtpu: 0.0.40
codegen_flags: <defaults>
</compile_context>

<pallas_src>
import functools
import math

import jax
import jax.numpy as jnp
import numpy as np
from jax import lax
from jax.experimental import pallas as pl
from jax.experimental.pallas import tpu as pltpu


def _mean_var_mlp_kernel(x_ref, w_ref, b_ref, out_ref, *,
                         state_dim, hidden_dim, log_max_std):
    """One batch tile.

    x_ref   : (TB, S)       batch tile, streamed (no wrapper transpose)
    w_ref   : (4, H, Kmax)  packed, zero-padded weights in PyTorch (out, in) layout
    b_ref   : (H, 4)        packed, zero-padded biases (layer-4 bias has the -2 fold)
    out_ref : (2, TB)       lane-dense output slab [mean; log_std]
    """
    S = state_dim
    H = hidden_dim
    nt = (((1,), (1,)), ((), ()))         # contract last dim of both operands (A @ B^T)

    x = x_ref[...]                        # (TB, S)
    b = b_ref[...]                        # (H, 4)

    # Layer 1: (H, S) @ (TB, S)^T -> (H, TB); batch stays on the lane axis throughout.
    h = lax.dot_general(w_ref[0][:, :S], x, nt,
                        preferred_element_type=jnp.float32) + b[:, 0:1]
    h = jnp.maximum(h, 0.0)

    h = jnp.dot(w_ref[1][:, :H], h, preferred_element_type=jnp.float32) + b[:, 1:2]
    h = jnp.maximum(h, 0.0)

    h = jnp.dot(w_ref[2][:, :H], h, preferred_element_type=jnp.float32) + b[:, 2:3]
    h = jnp.maximum(h, 0.0)

    # Layer 4 uses the zero-padded (H, H) weight; only rows 0 (mean) / 1 (log_std) are real.
    y = jnp.dot(w_ref[3][:, :H], h, preferred_element_type=jnp.float32) + b[:, 3:4]
    y = y[0:2, :]                         # (2, TB)

    if log_max_std is not None:           # static branch: only emitted for finite max_std
        row = lax.broadcasted_iota(jnp.int32, y.shape, 0)
        y = jnp.where(row == 1, jnp.minimum(y, log_max_std), y)

    out_ref[...] = y


def _pick_batch_tile(B, batch_tile):
    """Largest 128-lane-multiple tile <= batch_tile, keeping >=2 grid steps when the
    batch allows it (so the 'parallel' axis has work for v7x's second TensorCore)."""
    tb = min(int(batch_tile), int(B))
    if B >= 256:
        half = ((B + 1) // 2 + 127) // 128 * 128     # ceil(B/2) rounded up to 128 lanes
        tb = min(tb, half)
        tb = max(128, (tb // 128) * 128)
    return max(tb, 1)


@functools.partial(jax.jit, static_argnames=("max_std", "batch_tile"))
def mean_and_variance_reward_forward(state, params, max_std=np.inf, batch_tile=512):
    """state: (B, state_dim) f32. params: [W1,b1,W2,b2,W3,b3,W4,b4], W_i (out,in), b_i (out,1)."""
    B, S = state.shape
    w1, b1, w2, b2, w3, b3, w4, b4 = params
    H = w1.shape[0]
    O = w4.shape[0]                                   # == 2 for this module
    Kmax = max(S, H)

    # Fold the constant "-2" head offset into the final bias (log_std row).
    b4_eff = b4 + jnp.array([[0.0], [-2.0]], dtype=b4.dtype)

    # Pack all weights/biases into two zero-padded resident VMEM slabs.
    w_all = jnp.zeros((4, H, Kmax), jnp.float32)
    w_all = w_all.at[0, :, :S].set(w1)
    w_all = w_all.at[1, :, :H].set(w2)
    w_all = w_all.at[2, :, :H].set(w3)
    w_all = w_all.at[3, :O, :H].set(w4)
    b_all = jnp.zeros((H, 4), jnp.float32)
    b_all = b_all.at[:, 0].set(b1[:, 0])
    b_all = b_all.at[:, 1].set(b2[:, 0])
    b_all = b_all.at[:, 2].set(b3[:, 0])
    b_all = b_all.at[:O, 3].set(b4_eff[:, 0])

    # Static clamp threshold: plain Python float, only used when max_std is finite.
    log_max_std = float(np.log(max_std)) if np.isfinite(max_std) else None

    # Batch tiling + zero-padding to a full multiple of the tile (unmasked stores,
    # no undefined data in padded lanes).
    tb = _pick_batch_tile(B, batch_tile)
    grid_b = pl.cdiv(B, tb)
    B_pad = grid_b * tb
    state_in = state if B_pad == B else jnp.pad(state, ((0, B_pad - B), (0, 0)))

    kernel = functools.partial(_mean_var_mlp_kernel, state_dim=S, hidden_dim=H,
                               log_max_std=log_max_std)

    cost = pl.CostEstimate(
        flops=2 * B_pad * H * (S + 2 * H + O) + 4 * B_pad * H,
        transcendentals=0,
        bytes_accessed=4 * (B_pad * (S + 2) + w_all.size + b_all.size),
    )

    y_t = pl.pallas_call(
        kernel,
        out_shape=jax.ShapeDtypeStruct((2, B_pad), jnp.float32),
        grid=(grid_b,),
        in_specs=[
            pl.BlockSpec((tb, S), lambda i: (i, 0)),           # streamed batch tile
            pl.BlockSpec((4, H, Kmax), lambda i: (0, 0, 0)),   # resident packed weights
            pl.BlockSpec((H, 4), lambda i: (0, 0)),            # resident packed biases
        ],
        out_specs=pl.BlockSpec((2, tb), lambda i: (0, i)),     # lane-dense (2, B) slab
        compiler_params=pltpu.CompilerParams(
            dimension_semantics=("parallel",)),
        cost_estimate=cost,
    )(state_in, w_all, b_all)

    # (2, B_pad) -> (B, 2): [mean, log_std]; tiny transpose fused under jit.
    return y_t[:, :B].T


def init_params(key, state_dim, hidden_dim, output_dim=2, num_layers=4):
    """PyTorch-Linear-style init U(-1/sqrt(fan_in), 1/sqrt(fan_in)); W in (out, in) layout."""
    dims = [state_dim] + [hidden_dim] * (num_layers - 1) + [output_dim]
    params = []
    for i in range(num_layers):
        key, kw, kb = jax.random.split(key, 3)
        fan_in = dims[i]
        bound = 1.0 / math.sqrt(fan_in)
        W = jax.random.uniform(kw, (dims[i + 1], dims[i]), jnp.float32, -bound, bound)
        b = jax.random.uniform(kb, (dims[i + 1], 1), jnp.float32, -bound, bound)
        params += [W, b]
    return params


def ref_forward(x, p):
    """Pure-JAX reference matching the PyTorch module (max_std = inf)."""
    w1, b1, w2, b2, w3, b3, w4, b4 = p
    hp = lax.Precision.HIGHEST
    h = jnp.maximum(jnp.dot(x, w1.T, precision=hp) + b1.T, 0.0)
    h = jnp.maximum(jnp.dot(h, w2.T, precision=hp) + b2.T, 0.0)
    h = jnp.maximum(jnp.dot(h, w3.T, precision=hp) + b3.T, 0.0)
    y = jnp.dot(h, w4.T, precision=hp) + b4.T
    mean = y[:, 0]
    log_std = y[:, 1] - 2.0
    return jnp.stack([mean, log_std], axis=1)


if __name__ == "__main__":
    # Small shapes consistent with the module; batch splits into two lane-dense tiles.
    batch = 256
    state_dim = 16
    hidden_dim = 32

    key = jax.random.PRNGKey(0)
    key, k_state = jax.random.split(key)
    state = jax.random.normal(k_state, (batch, state_dim), dtype=jnp.float32)
    params = init_params(key, state_dim, hidden_dim)

    out = mean_and_variance_reward_forward(state, params)    # (batch, 2): [mean, log_std]
    out = jax.block_until_ready(out)

    ref = ref_forward(state, params)
    assert out.shape == (batch, 2), out.shape
    np.testing.assert_allclose(np.asarray(out), np.asarray(ref), rtol=1e-4, atol=1e-4)

    print("KERNEL_OK")
</pallas_src>

<mosaic_0001>
module attributes {stable_mosaic.version = 11 : i64} {
  func.func @_mean_var_mlp_kernel(%arg0: i32, %arg1: memref<128x16xf32, #tpu.memory_space<vmem>>, %arg2: memref<4x32x32xf32, #tpu.memory_space<vmem>>, %arg3: memref<32x4xf32, #tpu.memory_space<vmem>>, %arg4: memref<2x128xf32, #tpu.memory_space<vmem>>) attributes {dimension_semantics = [#tpu.dimension_semantics<parallel>], iteration_bounds = array<i64: 2>, scalar_prefetch = 0 : i64, scratch_operands = 0 : i64, tpu.core_type = #tpu.core_type<tc>, window_params = [{transform_indices = @transform_0, window_bounds = array<i64: 128, 16>}, {pipeline_mode = #tpu.pipeline_mode<synchronous>, transform_indices = @transform_1, window_bounds = array<i64: 4, 32, 32>}, {pipeline_mode = #tpu.pipeline_mode<synchronous>, transform_indices = @transform_2, window_bounds = array<i64: 32, 4>}, {transform_indices = @transform_3, window_bounds = array<i64: 2, 128>}]} {
    %c0 = arith.constant 0 : index
    %c0_0 = arith.constant 0 : index
    %0 = vector.load %arg1[%c0, %c0_0] : memref<128x16xf32, #tpu.memory_space<vmem>>, vector<128x16xf32>
    %c0_1 = arith.constant 0 : index
    %c0_2 = arith.constant 0 : index
    %1 = vector.load %arg3[%c0_1, %c0_2] : memref<32x4xf32, #tpu.memory_space<vmem>>, vector<32x4xf32>
    %c0_3 = arith.constant 0 : index
    %c0_4 = arith.constant 0 : index
    %c0_5 = arith.constant 0 : index
    %2 = vector.load %arg2[%c0_3, %c0_4, %c0_5] : memref<4x32x32xf32, #tpu.memory_space<vmem>>, vector<1x32x32xf32>
    %3 = vector.shape_cast %2 : vector<1x32x32xf32> to vector<32x32xf32>
    %4 = vector.extract_strided_slice %3 {offsets = [0, 0], sizes = [32, 16], strides = [1, 1]} : vector<32x32xf32> to vector<32x16xf32>
    %cst = arith.constant dense<0.000000e+00> : vector<32x128xf32>
    %5 = tpu.matmul %4, %0, %cst {dimension_numbers = #tpu.dot_dimension_numbers<[1], [1], [0], [0], [0, 0, 1, 0], [], []>} : vector<32x16xf32>, vector<128x16xf32>, vector<32x128xf32> -> vector<32x128xf32>
    %6 = vector.extract_strided_slice %1 {offsets = [0, 0], sizes = [32, 1], strides = [1, 1]} : vector<32x4xf32> to vector<32x1xf32>
    %7 = vector.broadcast %6 : vector<32x1xf32> to vector<32x128xf32>
    %8 = arith.addf %5, %7 : vector<32x128xf32>
    %cst_6 = arith.constant 0.000000e+00 : f32
    %9 = vector.broadcast %cst_6 : f32 to vector<32x128xf32>
    %10 = arith.maximumf %8, %9 : vector<32x128xf32>
    %c1 = arith.constant 1 : index
    %c0_7 = arith.constant 0 : index
    %c0_8 = arith.constant 0 : index
    %11 = vector.load %arg2[%c1, %c0_7, %c0_8] : memref<4x32x32xf32, #tpu.memory_space<vmem>>, vector<1x32x32xf32>
    %12 = vector.shape_cast %11 : vector<1x32x32xf32> to vector<32x32xf32>
    %cst_9 = arith.constant dense<0.000000e+00> : vector<32x128xf32>
    %13 = tpu.matmul %12, %10, %cst_9 {dimension_numbers = #tpu.dot_dimension_numbers<[1], [0], [0], [1], [0, 0, 1, 1], [], []>} : vector<32x32xf32>, vector<32x128xf32>, vector<32x128xf32> -> vector<32x128xf32>
    %14 = vector.extract_strided_slice %1 {offsets = [0, 1], sizes = [32, 1], strides = [1, 1]} : vector<32x4xf32> to vector<32x1xf32>
    %15 = vector.broadcast %14 : vector<32x1xf32> to vector<32x128xf32>
    %16 = arith.addf %13, %15 : vector<32x128xf32>
    %cst_10 = arith.constant 0.000000e+00 : f32
    %17 = vector.broadcast %cst_10 : f32 to vector<32x128xf32>
    %18 = arith.maximumf %16, %17 : vector<32x128xf32>
    %c2 = arith.constant 2 : index
    %c0_11 = arith.constant 0 : index
    %c0_12 = arith.constant 0 : index
    %19 = vector.load %arg2[%c2, %c0_11, %c0_12] : memref<4x32x32xf32, #tpu.memory_space<vmem>>, vector<1x32x32xf32>
    %20 = vector.shape_cast %19 : vector<1x32x32xf32> to vector<32x32xf32>
    %cst_13 = arith.constant dense<0.000000e+00> : vector<32x128xf32>
    %21 = tpu.matmul %20, %18, %cst_13 {dimension_numbers = #tpu.dot_dimension_numbers<[1], [0], [0], [1], [0, 0, 1, 1], [], []>} : vector<32x32xf32>, vector<32x128xf32>, vector<32x128xf32> -> vector<32x128xf32>
    %22 = vector.extract_strided_slice %1 {offsets = [0, 2], sizes = [32, 1], strides = [1, 1]} : vector<32x4xf32> to vector<32x1xf32>
    %23 = vector.broadcast %22 : vector<32x1xf32> to vector<32x128xf32>
    %24 = arith.addf %21, %23 : vector<32x128xf32>
    %cst_14 = arith.constant 0.000000e+00 : f32
    %25 = vector.broadcast %cst_14 : f32 to vector<32x128xf32>
    %26 = arith.maximumf %24, %25 : vector<32x128xf32>
    %c3 = arith.constant 3 : index
    %c0_15 = arith.constant 0 : index
    %c0_16 = arith.constant 0 : index
    %27 = vector.load %arg2[%c3, %c0_15, %c0_16] : memref<4x32x32xf32, #tpu.memory_space<vmem>>, vector<1x32x32xf32>
    %28 = vector.shape_cast %27 : vector<1x32x32xf32> to vector<32x32xf32>
    %cst_17 = arith.constant dense<0.000000e+00> : vector<32x128xf32>
    %29 = tpu.matmul %28, %26, %cst_17 {dimension_numbers = #tpu.dot_dimension_numbers<[1], [0], [0], [1], [0, 0, 1, 1], [], []>} : vector<32x32xf32>, vector<32x128xf32>, vector<32x128xf32> -> vector<32x128xf32>
    %30 = vector.extract_strided_slice %1 {offsets = [0, 3], sizes = [32, 1], strides = [1, 1]} : vector<32x4xf32> to vector<32x1xf32>
    %31 = vector.broadcast %30 : vector<32x1xf32> to vector<32x128xf32>
    %32 = arith.addf %29, %31 : vector<32x128xf32>
    %33 = vector.extract_strided_slice %32 {offsets = [0, 0], sizes = [2, 128], strides = [1, 1]} : vector<32x128xf32> to vector<2x128xf32>
    %c0_18 = arith.constant 0 : index
    %c0_19 = arith.constant 0 : index
    %34 = vector.load %arg4[%c0_18, %c0_19] : memref<2x128xf32, #tpu.memory_space<vmem>>, vector<2x128xf32>
    tpu.vector_store %arg4[%c0_18, %c0_19], %33 {strides = array<i32>} : memref<2x128xf32, #tpu.memory_space<vmem>>, vector<2x128xf32>,
    return
  }
  func.func @transform_0(%arg0: i32) -> (i32, i32) {
    %c0_i32 = arith.constant 0 : i32
    %c0_i32_0 = arith.constant 0 : i32
    return %arg0, %c0_i32 : i32, i32
  }
  func.func @transform_1(%arg0: i32) -> (i32, i32, i32) {
    %c0_i32 = arith.constant 0 : i32
    %c0_i32_0 = arith.constant 0 : i32
    %c0_i32_1 = arith.constant 0 : i32
    %c0_i32_2 = arith.constant 0 : i32
    return %c0_i32, %c0_i32_0, %c0_i32_1 : i32, i32, i32
  }
  func.func @transform_2(%arg0: i32) -> (i32, i32) {
    %c0_i32 = arith.constant 0 : i32
    %c0_i32_0 = arith.constant 0 : i32
    %c0_i32_1 = arith.constant 0 : i32
    return %c0_i32, %c0_i32_0 : i32, i32
  }
  func.func @transform_3(%arg0: i32) -> (i32, i32) {
    %c0_i32 = arith.constant 0 : i32
    %c0_i32_0 = arith.constant 0 : i32
    return %c0_i32, %arg0 : i32, i32
  }
}

</mosaic_0001>

<llo_original>
// kernel: mean_and_variance_reward_forward.1
$region0: #{mean_and_variance_reward_forward.1}
  #allocation0 [shape = 'u32[]', space=smem, size = 0x4, offset = 0x4, fixed_abs, tag = 'smem constant byte address 0x4 - core index']
  #allocation1 [shape = 'u32[72,128]{1,0:T(1,128)}', space=vmem, size = 0x9000, scoped, tag = 'internal scratch']
  %s0 = inlined_call_operand.vmem [shape: f32[256,16], index: 0, kind: input, shape index: {}]
  %s1 = inlined_call_operand.vmem [shape: f32[4,32,32], index: 1, kind: input, shape index: {}]
  %s2 = inlined_call_operand.vmem [shape: f32[32,4], index: 2, kind: input, shape index: {}]
  %s3 = inlined_call_operand.hbm [shape: f32[2,256], index: 3, kind: output, shape index: {}]
  %s4 = sld [smem:[#allocation0]]
  $region45: #{mean_and_variance_reward_forward.1} parent=0
    _
  %s6 = ssub.s32 1, %s4
  %s7 = scalar_select 0, %s6, %s4
  $region1: #{mean_and_variance_reward_forward.1} parent=0
    #allocation2 [shape = 'u8[2048]{0}', space=vmem, size = 0x800, scoped, tag = 'output window, operand 0']
    #allocation3 [shape = 's32[2]{0}', space=sflag, size = 0x8, scoped, tag = 'scoped memory for mean_and_variance_reward_forward.1']
    %8 = vsyncpa [#allocation3], 0
    %s9 = scalar_lea.sflag [#allocation3], 1
    %10 = vsyncpa %s9, 0
    loop: start=0, step=1, limit=4
    $region2: #{mean_and_variance_reward_forward.1} parent=1 // loop_pre_header
      _
    $region3: #{mean_and_variance_reward_forward.1} parent=1 // loop_header
      %s12 = sphi 0, %s16
      %p13 = scmp.ge.s32.totalorder %s12, 4
      %s22 = sphi 0, %s24
      %s25 = sphi 0, %s22
      %s26 = sphi 0, %s25
      %s42 = sphi 0, %s26
      %s46 = sphi 0, %s46
      %s48 = sphi 0, %s46
      %s49 = sphi 0, %s48
      %s63 = sphi 0, %s49
      %s67 = sphi 0, %s67
      %s69 = sphi 0, %s67
      %s70 = sphi 0, %s69
      %s84 = sphi 0, %s70
      %s90 = sphi 0, %s92
      %s93 = sphi 0, %s90
      %s94 = sphi 0, %s93
      %s110 = sphi 0, %s94
    $region4: #{mean_and_variance_reward_forward.1} parent=1 // loop_header_branch
      %15 = sbr.rel (%p13) target = $region8
    $region5: #{mean_and_variance_reward_forward.1} parent=1 // loop_body
      %s17 = ssub.s32 %s12, 1
      %s18 = ssub.s32 %s12, 2
      %s19 = sadd.s32 %s12, 1
      %s20 = ssub.s32 %s12, %s19
      %p21 = scmp.eq.s32.totalorder %s20, 0
      %s23 = sadd.s32 %s22, 1
      %s24 = scalar_select %p21, %s22, %s23
      %p27 = pneg %p21
      %p28 = scmp.eq.s32.totalorder %s12, 1
      %p29 = por %p27, %p28
      %p30 = scmp.ne.s32.totalorder %s22, %s25
      %p31 = scmp.eq.s32.totalorder %s12, 0
      %p32 = por %p30, %p31
      %p33 = scmp.ne.s32.totalorder %s22, %s25
      %p34 = scmp.eq.s32.totalorder %s17, 1
      %p35 = por %p33, %p34
      %p36 = scmp.ne.s32.totalorder %s25, %s26
      %p37 = scmp.eq.s32.totalorder %s17, 0
      %p38 = por %p36, %p37
      %p39 = scmp.ne.s32.totalorder %s25, %s26
      %p40 = scmp.eq.s32.totalorder %s18, 1
      %p41 = por %p39, %p40
      %p43 = scmp.ne.s32.totalorder %s26, %s42
      %p44 = scmp.eq.s32.totalorder %s18, 0
      %p45 = por %p43, %p44
      %s47 = sadd.s32 %s46, 1
      %p50 = scmp.eq.s32.totalorder %s12, 1
      %p51 = scmp.ne.s32.totalorder %s46, %s48
      %p52 = scmp.eq.s32.totalorder %s12, 0
      %p53 = por %p51, %p52
      %p54 = scmp.ne.s32.totalorder %s46, %s48
      %p55 = scmp.eq.s32.totalorder %s17, 1
      %p56 = por %p54, %p55
      %p57 = scmp.ne.s32.totalorder %s48, %s49
      %p58 = scmp.eq.s32.totalorder %s17, 0
      %p59 = por %p57, %p58
      %p60 = scmp.ne.s32.totalorder %s48, %s49
      %p61 = scmp.eq.s32.totalorder %s18, 1
      %p62 = por %p60, %p61
      %p64 = scmp.ne.s32.totalorder %s49, %s63
      %p65 = scmp.eq.s32.totalorder %s18, 0
      %p66 = por %p64, %p65
      %s68 = sadd.s32 %s67, 1
      %p71 = scmp.eq.s32.totalorder %s12, 1
      %p72 = scmp.ne.s32.totalorder %s67, %s69
      %p73 = scmp.eq.s32.totalorder %s12, 0
      %p74 = por %p72, %p73
      %p75 = scmp.ne.s32.totalorder %s67, %s69
      %p76 = scmp.eq.s32.totalorder %s17, 1
      %p77 = por %p75, %p76
      %p78 = scmp.ne.s32.totalorder %s69, %s70
      %p79 = scmp.eq.s32.totalorder %s17, 0
      %p80 = por %p78, %p79
      %p81 = scmp.ne.s32.totalorder %s69, %s70
      %p82 = scmp.eq.s32.totalorder %s18, 1
      %p83 = por %p81, %p82
      %p85 = scmp.ne.s32.totalorder %s70, %s84
      %p86 = scmp.eq.s32.totalorder %s18, 0
      %p87 = por %p85, %p86
      %s88 = ssub.s32 %s12, %s19
      %p89 = scmp.eq.s32.totalorder %s88, 0
      %s91 = sadd.s32 %s90, 1
      %s92 = scalar_select %p89, %s90, %s91
      %p95 = pneg %p89
      %p96 = scmp.eq.s32.totalorder %s12, 1
      %p97 = por %p95, %p96
      %p98 = scmp.ne.s32.totalorder %s90, %s93
      %p99 = scmp.eq.s32.totalorder %s12, 0
      %p100 = por %p98, %p99
      %p101 = scmp.ne.s32.totalorder %s90, %s93
      %p102 = scmp.eq.s32.totalorder %s17, 1
      %p103 = por %p101, %p102
      %p104 = scmp.ne.s32.totalorder %s93, %s94
      %p105 = scmp.eq.s32.totalorder %s17, 0
      %p106 = por %p104, %p105
      %p107 = scmp.ne.s32.totalorder %s93, %s94
      %p108 = scmp.eq.s32.totalorder %s18, 1
      %p109 = por %p107, %p108
      %p111 = scmp.ne.s32.totalorder %s94, %s110
      %p112 = scmp.eq.s32.totalorder %s18, 0
      %p113 = por %p111, %p112
      %p114 = scmp.le.s32.totalorder 1, %s12
      %p115 = scmp.lt.s32.totalorder %s12, 3
      %p116 = pnand %p114, %p115
      %p117 = pneg %p116
      // Predicated region
      $region9: #{mean_and_variance_reward_forward.1} parent=5 // pred_check
        _
      $region10: #{mean_and_variance_reward_forward.1} parent=5 // pred_check_branch
        %119 = sbr.rel (%p116) target = $region12
      $region11: #{mean_and_variance_reward_forward.1} parent=5 // pred_region
        %s120 = ssub.s32 %s12, 1
        // Predicated region
        $region13: #{mean_and_variance_reward_forward.1} parent=11 // pred_check
          %p121 = pneg %p59
        $region14: #{mean_and_variance_reward_forward.1} parent=11 // pred_check_branch
          %123 = sbr.rel (%p121) target = $region16
        $region15: #{mean_and_variance_reward_forward.1} parent=11 // pred_region
          _
        $region16: #{mean_and_variance_reward_forward.1} parent=11 // pred_fallthru
          _
        // Predicated region
        $region17: #{mean_and_variance_reward_forward.1} parent=11 // pred_check
          %p124 = pneg %p80
        $region18: #{mean_and_variance_reward_forward.1} parent=11 // pred_check_branch
          %126 = sbr.rel (%p124) target = $region20
        $region19: #{mean_and_variance_reward_forward.1} parent=11 // pred_region
          _
        $region20: #{mean_and_variance_reward_forward.1} parent=11 // pred_fallthru
          _
      $region12: #{mean_and_variance_reward_forward.1} parent=5 // pred_fallthru
        _
      %p127 = scmp.lt.s32.totalorder %s12, 2
      // Predicated region
      $region21: #{mean_and_variance_reward_forward.1} parent=5 // pred_check
        %p128 = pneg %p127
      $region22: #{mean_and_variance_reward_forward.1} parent=5 // pred_check_branch
        %130 = sbr.rel (%p128) target = $region24
      $region23: #{mean_and_variance_reward_forward.1} parent=5 // pred_region
        // Predicated region
        $region25: #{mean_and_variance_reward_forward.1} parent=23 // pred_check
          %p131 = pneg %p32
        $region26: #{mean_and_variance_reward_forward.1} parent=23 // pred_check_branch
          %133 = sbr.rel (%p131) target = $region28
        $region27: #{mean_and_variance_reward_forward.1} parent=23 // pred_region
          %s134 = smul.u32 16, %s12
          %p135 = scmp.lt.s32.totalorder %s134, 31
          %s136 = scalar_select %p135, %s134, 31
          %s137 = smul.addr %s136, 8
          %s138 = scalar_lea.vmem %s0, %s137
          %s139 = smul.u32 16, %s12
        $region28: #{mean_and_variance_reward_forward.1} parent=23 // pred_fallthru
          _
      $region24: #{mean_and_variance_reward_forward.1} parent=5 // pred_fallthru
        _
      %p140 = scmp.le.s32.totalorder 1, %s12
      %p141 = scmp.lt.s32.totalorder %s12, 3
      %p142 = pnand %p140, %p141
      %p143 = pneg %p142
      // Predicated region
      $region29: #{mean_and_variance_reward_forward.1} parent=5 // pred_check
        _
      $region30: #{mean_and_variance_reward_forward.1} parent=5 // pred_check_branch
        %145 = sbr.rel (%p142) target = $region32
      $region31: #{mean_and_variance_reward_forward.1} parent=5 // pred_region
        %s146 = ssub.s32 %s12, 1
        %s147 = smul.u32 16, %s17
        %p148 = scmp.lt.s32.totalorder %s147, 31
        %s149 = scalar_select %p148, %s147, 31
        %s150 = smul.addr %s149, 8
        %s151 = scalar_lea.vmem %s0, %s150
        %p152 = pneg %p38
        %p153 = pneg %p35
        %p154 = pneg %p59
        %p155 = pneg %p56
        %p156 = pneg %p80
        %p157 = pneg %p77
        %p158 = pneg %p106
        %p159 = pneg %p103
        %s160 = sand.u32 %s93, 1
        %s161 = scalar_lea.sflag [#allocation3], %s160
        %s162 = sand.u32 %s93, 1
        %s163 = smul.addr %s162, 2
        %s164 = scalar_lea.vmem [#allocation2], %s163
        %s165 = smul.u32 16, %s17
        %p166 = scmp.lt.s32.totalorder %s165, 31
        %s167 = scalar_select %p166, %s165, 31
        %s168 = smul.addr %s167, 8
        %s169 = scalar_lea.vmem %s0, %s168
        %s170 = smul.u32 16, %s17
        %v171 = vld [vmem:[%s169] sm:$0xff]
        %v172 = vld [vmem:[%s169 + $0x8] sm:$0xff]
        %v173 = vld [vmem:[%s169 + $0x10] sm:$0xff]
        %v174 = vld [vmem:[%s169 + $0x18] sm:$0xff]
        %v175 = vld [vmem:[%s169 + $0x20] sm:$0xff]
        %v176 = vld [vmem:[%s169 + $0x28] sm:$0xff]
        %v177 = vld [vmem:[%s169 + $0x30] sm:$0xff]
        %v178 = vld [vmem:[%s169 + $0x38] sm:$0xff]
        %v179 = vld [vmem:[%s169 + $0x40] sm:$0xff]
        %v180 = vld [vmem:[%s169 + $0x48] sm:$0xff]
        %v181 = vld [vmem:[%s169 + $0x50] sm:$0xff]
        %v182 = vld [vmem:[%s169 + $0x58] sm:$0xff]
        %v183 = vld [vmem:[%s169 + $0x60] sm:$0xff]
        %v184 = vld [vmem:[%s169 + $0x68] sm:$0xff]
        %v185 = vld [vmem:[%s169 + $0x70] sm:$0xff]
        %v186 = vld [vmem:[%s169 + $0x78] sm:$0xff]
        %v187 = vld [vmem:[%s2] sm:$0xff]
        %v188 = vld [vmem:[%s2 + $0x8] sm:$0xff]
        %v189 = vld [vmem:[%s2 + $0x10] sm:$0xff]
        %v190 = vld [vmem:[%s2 + $0x18] sm:$0xff]
        %v191 = vld [vmem:[%s1] sm:$0xff]
        %v192 = vld [vmem:[%s1 + $0x8] sm:$0xff]
        %v193 = vld [vmem:[%s1 + $0x10] sm:$0xff]
        %v194 = vld [vmem:[%s1 + $0x18] sm:$0xff]
        %196 = vset.pattern.permute.xlu0 0
        %197 = vperm.xlu0 %196, %v187
        %v198 = vpop.permute.xlu0 %197
        %201 = vset.pattern.permute.xlu0 0
        %202 = vperm.xlu0 %201, %v188
        %v203 = vpop.permute.xlu0 %202
        %206 = vset.pattern.permute.xlu0 0
        %207 = vperm.xlu0 %206, %v189
        %v208 = vpop.permute.xlu0 %207
        %211 = vset.pattern.permute.xlu0 0
        %212 = vperm.xlu0 %211, %v190
        %v213 = vpop.permute.xlu0 %212
        %vm215 = vcmask 130048
        %v217 = vsel %vm215, %v191, 0
        %v220 = vsel %vm215, %v192, 0
        %v223 = vsel %vm215, %v193, 0
        %v226 = vsel %vm215, %v194, 0
        %v229 = vsel %vm215, %v171, 0
        %v232 = vsel %vm215, %v172, 0
        %v235 = vsel %vm215, %v173, 0
        %v238 = vsel %vm215, %v174, 0
        %v241 = vsel %vm215, %v175, 0
        %v244 = vsel %vm215, %v176, 0
        %v247 = vsel %vm215, %v177, 0
        %v250 = vsel %vm215, %v178, 0
        %v253 = vsel %vm215, %v179, 0
        %v256 = vsel %vm215, %v180, 0
        %v259 = vsel %vm215, %v181, 0
        %v262 = vsel %vm215, %v182, 0
        %v265 = vsel %vm215, %v183, 0
        %v268 = vsel %vm215, %v184, 0
        %v271 = vsel %vm215, %v185, 0
        %v274 = vsel %vm215, %v186, 0
        %276 = vmatpush.xpose.msra.mxu0 %v274
        %277 = vmatpush.xpose.msra.mxu0 %v271
        %278 = vmatpush.xpose.msra.mxu0 %v268
        %279 = vmatpush.xpose.msra.mxu0 %v265
        %280 = vmatpush.xpose.msra.mxu0 %v262
        %281 = vmatpush.xpose.msra.mxu0 %v259
        %282 = vmatpush.xpose.msra.mxu0 %v256
        %283 = vmatpush.xpose.msra.mxu0 %v253
        %284 = vmatpush.xpose.msra.mxu0 %v250
        %285 = vmatpush.xpose.msra.mxu0 %v247
        %286 = vmatpush.xpose.msra.mxu0 %v244
        %287 = vmatpush.xpose.msra.mxu0 %v241
        %288 = vmatpush.xpose.msra.mxu0 %v238
        %289 = vmatpush.xpose.msra.mxu0 %v235
        %290 = vmatpush.xpose.msra.mxu0 %v232
        %291 = vmatpush.xpose.msra.mxu0 %v229
        %292 = vmatmul.f32.gmra.mxu0 %v217
        %v293 = vpop.f32.mrf.mxu0
        %v294 = vadd.f32 %v198, %v293
        %295 = vmatmul.f32.gmra.mxu0 %v220
        %v296 = vpop.f32.mrf.mxu0
        %v297 = vadd.f32 %v203, %v296
        %298 = vmatmul.f32.gmra.mxu0 %v223
        %v299 = vpop.f32.mrf.mxu0
        %v300 = vadd.f32 %v208, %v299
        %301 = vmatmul.f32.gmra.mxu0 %v226
        %v302 = vpop.f32.mrf.mxu0
        %v303 = vadd.f32 %v213, %v302
        %304 = vdwg.mxu0
        %v305 = vmax.f32 %v294, 0.0
        %v306 = vmax.f32 %v297, 0.0
        %v307 = vmax.f32 %v300, 0.0
        %v308 = vmax.f32 %v303, 0.0
        %s309 = scalar_lea.vmem %s1, 32
        %v310 = vld [vmem:[%s309] sm:$0xff]
        %v311 = vld [vmem:[%s309 + $0x8] sm:$0xff]
        %v312 = vld [vmem:[%s309 + $0x10] sm:$0xff]
        %v313 = vld [vmem:[%s309 + $0x18] sm:$0xff]
        %314 = vset.pattern.permute.xlu0 1
        %315 = vperm.xlu0 %314, %v187
        %v316 = vpop.permute.xlu0 %315
        %318 = vset.pattern.permute.xlu0 1
        %319 = vperm.xlu0 %318, %v188
        %v320 = vpop.permute.xlu0 %319
        %322 = vset.pattern.permute.xlu0 1
        %323 = vperm.xlu0 %322, %v189
        %v324 = vpop.permute.xlu0 %323
        %326 = vset.pattern.permute.xlu0 1
        %327 = vperm.xlu0 %326, %v190
        %v328 = vpop.permute.xlu0 %327
        %vm330 = vcmask 261120
        %v332 = vsel %vm330, %v310, 0
        %v335 = vsel %vm330, %v311, 0
        %v338 = vsel %vm330, %v312, 0
        %v341 = vsel %vm330, %v313, 0
        %343 = vmatpush.msra.mxu0 0.0
        %344 = vmatpush.msra.mxu0 0.0
        %345 = vmatpush.msra.mxu0 0.0
        %346 = vmatpush.msra.mxu0 0.0
        %347 = vmatpush.msra.mxu0 0.0
        %348 = vmatpush.msra.mxu0 0.0
        %349 = vmatpush.msra.mxu0 0.0
        %350 = vmatpush.msra.mxu0 0.0
        %351 = vmatpush.msra.mxu0 0.0
        %352 = vmatpush.msra.mxu0 0.0
        %353 = vmatpush.msra.mxu0 0.0
        %354 = vmatpush.msra.mxu0 0.0
        %355 = vmatpush.msra.mxu0 %v308
        %356 = vmatpush.msra.mxu0 %v307
        %357 = vmatpush.msra.mxu0 %v306
        %358 = vmatpush.msra.mxu0 %v305
        %359 = vmatmul.f32.gmra.mxu0 %v332
        %v360 = vpop.f32.mrf.mxu0
        %v361 = vadd.f32 %v316, %v360
        %362 = vmatmul.f32.gmra.mxu0 %v335
        %v363 = vpop.f32.mrf.mxu0
        %v364 = vadd.f32 %v320, %v363
        %365 = vmatmul.f32.gmra.mxu0 %v338
        %v366 = vpop.f32.mrf.mxu0
        %v367 = vadd.f32 %v324, %v366
        %368 = vmatmul.f32.gmra.mxu0 %v341
        %v369 = vpop.f32.mrf.mxu0
        %v370 = vadd.f32 %v328, %v369
        %371 = vdwg.mxu0
        %v372 = vmax.f32 %v361, 0.0
        %v373 = vmax.f32 %v364, 0.0
        %v374 = vmax.f32 %v367, 0.0
        %v375 = vmax.f32 %v370, 0.0
        %s376 = scalar_lea.vmem %s1, 64
        %v377 = vld [vmem:[%s376] sm:$0xff]
        %v378 = vld [vmem:[%s376 + $0x8] sm:$0xff]
        %v379 = vld [vmem:[%s376 + $0x10] sm:$0xff]
        %v380 = vld [vmem:[%s376 + $0x18] sm:$0xff]
        %381 = vset.pattern.permute.xlu0 2
        %382 = vperm.xlu0 %381, %v187
        %v383 = vpop.permute.xlu0 %382
        %385 = vset.pattern.permute.xlu0 2
        %386 = vperm.xlu0 %385, %v188
        %v387 = vpop.permute.xlu0 %386
        %389 = vset.pattern.permute.xlu0 2
        %390 = vperm.xlu0 %389, %v189
        %v391 = vpop.permute.xlu0 %390
        %393 = vset.pattern.permute.xlu0 2
        %394 = vperm.xlu0 %393, %v190
        %v395 = vpop.permute.xlu0 %394
        %v398 = vsel %vm330, %v377, 0
        %v401 = vsel %vm330, %v378, 0
        %v404 = vsel %vm330, %v379, 0
        %v407 = vsel %vm330, %v380, 0
        %409 = vmatpush.msra.mxu0 0.0
        %410 = vmatpush.msra.mxu0 0.0
        %411 = vmatpush.msra.mxu0 0.0
        %412 = vmatpush.msra.mxu0 0.0
        %413 = vmatpush.msra.mxu0 0.0
        %414 = vmatpush.msra.mxu0 0.0
        %415 = vmatpush.msra.mxu0 0.0
        %416 = vmatpush.msra.mxu0 0.0
        %417 = vmatpush.msra.mxu0 0.0
        %418 = vmatpush.msra.mxu0 0.0
        %419 = vmatpush.msra.mxu0 0.0
        %420 = vmatpush.msra.mxu0 0.0
        %421 = vmatpush.msra.mxu0 %v375
        %422 = vmatpush.msra.mxu0 %v374
        %423 = vmatpush.msra.mxu0 %v373
        %424 = vmatpush.msra.mxu0 %v372
        %425 = vmatmul.f32.gmra.mxu0 %v398
        %v426 = vpop.f32.mrf.mxu0
        %v427 = vadd.f32 %v383, %v426
        %428 = vmatmul.f32.gmra.mxu0 %v401
        %v429 = vpop.f32.mrf.mxu0
        %v430 = vadd.f32 %v387, %v429
        %431 = vmatmul.f32.gmra.mxu0 %v404
        %v432 = vpop.f32.mrf.mxu0
        %v433 = vadd.f32 %v391, %v432
        %434 = vmatmul.f32.gmra.mxu0 %v407
        %v435 = vpop.f32.mrf.mxu0
        %v436 = vadd.f32 %v395, %v435
        %437 = vdwg.mxu0
        %v438 = vmax.f32 %v427, 0.0
        %v439 = vmax.f32 %v430, 0.0
        %v440 = vmax.f32 %v433, 0.0
        %v441 = vmax.f32 %v436, 0.0
        %s442 = scalar_lea.vmem %s1, 96
        %v443 = vld [vmem:[%s442] sm:$0xff]
        %v444 = vld [vmem:[%s442 + $0x8] sm:$0xff]
        %v445 = vld [vmem:[%s442 + $0x10] sm:$0xff]
        %v446 = vld [vmem:[%s442 + $0x18] sm:$0xff]
        %447 = vset.pattern.permute.xlu0 3
        %448 = vperm.xlu0 %447, %v187
        %v449 = vpop.permute.xlu0 %448
        %451 = vset.pattern.permute.xlu0 3
        %452 = vperm.xlu0 %451, %v188
        %v453 = vpop.permute.xlu0 %452
        %454 = vset.pattern.permute.xlu0 3
        %455 = vperm.xlu0 %454, %v189
        %v456 = vpop.permute.xlu0 %455
        %457 = vset.pattern.permute.xlu0 3
        %458 = vperm.xlu0 %457, %v190
        %v459 = vpop.permute.xlu0 %458
        %v461 = vsel %vm330, %v443, 0
        %v464 = vsel %vm330, %v444, 0
        %v467 = vsel %vm330, %v445, 0
        %v470 = vsel %vm330, %v446, 0
        %472 = vmatpush.msra.mxu0 0.0
        %473 = vmatpush.msra.mxu0 0.0
        %474 = vmatpush.msra.mxu0 0.0
        %475 = vmatpush.msra.mxu0 0.0
        %476 = vmatpush.msra.mxu0 0.0
        %477 = vmatpush.msra.mxu0 0.0
        %478 = vmatpush.msra.mxu0 0.0
        %479 = vmatpush.msra.mxu0 0.0
        %480 = vmatpush.msra.mxu0 0.0
        %481 = vmatpush.msra.mxu0 0.0
        %482 = vmatpush.msra.mxu0 0.0
        %483 = vmatpush.msra.mxu0 0.0
        %484 = vmatpush.msra.mxu0 %v441
        %485 = vmatpush.msra.mxu0 %v440
        %486 = vmatpush.msra.mxu0 %v439
        %487 = vmatpush.msra.mxu0 %v438
        %488 = vmatmul.f32.gmra.mxu0 %v461
        %v489 = vpop.f32.mrf.mxu0
        %v490 = vadd.f32 %v449, %v489
        %491 = vmatmul.f32.gmra.mxu0 %v464
        %v492 = vpop.f32.mrf.mxu0
        %493 = vmatmul.f32.gmra.mxu0 %v467
        %v494 = vpop.f32.mrf.mxu0
        %495 = vmatmul.f32.gmra.mxu0 %v470
        %v496 = vpop.f32.mrf.mxu0
        %497 = vdwg.mxu0
        %498 = vst [vmem:[%s164] sm:$0x3] %v490
        %s499 = sand.u32 %s93, 1
        %s500 = scalar_lea.sflag [#allocation3], %s499
        %s501 = sand.u32 %s93, 1
        %s502 = smul.addr %s501, 2
        %s503 = scalar_lea.vmem [#allocation2], %s502
        // Predicated region
        $region33: #{mean_and_variance_reward_forward.1} parent=31 // pred_check
          %p504 = pneg %p103
        $region34: #{mean_and_variance_reward_forward.1} parent=31 // pred_check_branch
          %506 = sbr.rel (%p504) target = $region36
        $region35: #{mean_and_variance_reward_forward.1} parent=31 // pred_region
          %508 = vsyncadd %s500, 0
          %s509 = smul.addr %s17, 2
          %s510 = scalar_lea.hbm %s3, %s509
          %s512 = sshll.u32 %s503, 4
          %s513 = int_to_ptr.vmem [resolvable:$true] %s512
          %s514 = sshll.u32 %s510, 4
          %s515 = int_to_ptr.hbm [resolvable:$true] %s514
          %517 = dma.vmem_to_hbm [thread:$0]  %s513, 32, %s515, %s500
        $region36: #{mean_and_variance_reward_forward.1} parent=31 // pred_fallthru
          _
      $region32: #{mean_and_variance_reward_forward.1} parent=5 // pred_fallthru
        _
      %p518 = scmp.le.s32.totalorder 2, %s12
      // Predicated region
      $region37: #{mean_and_variance_reward_forward.1} parent=5 // pred_check
        %p519 = pneg %p518
      $region38: #{mean_and_variance_reward_forward.1} parent=5 // pred_check_branch
        %521 = sbr.rel (%p519) target = $region40
      $region39: #{mean_and_variance_reward_forward.1} parent=5 // pred_region
        %s522 = ssub.s32 %s12, 2
        // Predicated region
        $region41: #{mean_and_variance_reward_forward.1} parent=39 // pred_check
          %p523 = pneg %p109
        $region42: #{mean_and_variance_reward_forward.1} parent=39 // pred_check_branch
          %525 = sbr.rel (%p523) target = $region44
        $region43: #{mean_and_variance_reward_forward.1} parent=39 // pred_region
          %s526 = sand.u32 %s94, 1
          %s527 = scalar_lea.sflag [#allocation3], %s526
          %s528 = sand.u32 %s94, 1
          %s529 = smul.addr %s528, 2
          %s530 = scalar_lea.vmem [#allocation2], %s529
          %532 = dma.done %s527, 32
        $region44: #{mean_and_variance_reward_forward.1} parent=39 // pred_fallthru
          _
      $region40: #{mean_and_variance_reward_forward.1} parent=5 // pred_fallthru
        _
    $region6: #{mean_and_variance_reward_forward.1} parent=1 // loop_footer
      %s16 = sadd.s32 1, %s12
    $region7: #{mean_and_variance_reward_forward.1} parent=1 // loop_footer_branch
      %11 = sbr.rel target = $region3
    $region8: #{mean_and_variance_reward_forward.1} parent=1 // loop_exit
      _
    %533 = vsyncpa [#allocation3], 1
    %s534 = scalar_lea.sflag [#allocation3], 1
    %535 = vsyncpa %s534, 1

</llo_original>
